<compile_context>
chip_gen: v6e
topology: v6e:2x2x1
jax: 0.10.0
libtpu: 0.0.40
codegen_flags: <defaults>
</compile_context>

<pallas_src>
import functools
import math

import jax
import jax.numpy as jnp
from jax.experimental import pallas as pl
from jax.experimental.pallas import tpu as pltpu


def _round_up(x, m):
    return (x + m - 1) // m * m


def _pick_batch_tile(B, block_b):
    """As large as block_b, but split so the grid has >= 2 steps whenever the
    batch allows it (keeps both v7x TensorCores busy under 'parallel')."""
    B8 = _round_up(B, 8)
    if B8 <= 8:
        return 8
    if B8 <= 2 * block_b:
        return max(8, _round_up((B8 + 1) // 2, 8))
    return block_b


def _textcnn_fused_kernel(x_ref, w_ref, mask_ref, o_ref, *, Kmax, Lspan_pad, L_ext):
    """Fused multi-branch Conv1d + bias + ReLU + global max-pool for one batch tile.

    x_ref   : (TB, L, D)          f32 activations (cast to bf16 in-kernel)
    w_ref   : (KD_pad, C_pad)     bf16 packed weights; row j*D+d holds tap j,
                                  row Kmax*D holds the bias, remaining rows 0
    mask_ref: (Lspan_pad, C_pad)  f32 0/1 validity mask (per-branch Lout + pads)
    o_ref   : (TB, C_pad)         f32 pooled features (lane-dense, C_pad % 128 == 0)
    """
    TB, L, D = x_ref.shape
    KD_pad, C_pad = w_ref.shape

    # Cast f32 -> bf16 inside the kernel (no wrapper-side HBM rewrite of x) and
    # zero-pad the time axis in VMEM so every shifted tap slice is in bounds.
    xb = x_ref[...].astype(w_ref.dtype)
    if L_ext > L:
        xb = jnp.concatenate(
            [xb, jnp.zeros((TB, L_ext - L, D), xb.dtype)], axis=1)

    # im2col: Kmax time-shifted views concatenated on the lane axis, plus a
    # constant-1 block whose first column brings the bias in via the matmul
    # (the remaining pad columns hit zero weight rows).
    parts = [xb[:, j:j + Lspan_pad, :] for j in range(Kmax)]
    parts.append(jnp.ones((TB, Lspan_pad, KD_pad - Kmax * D), xb.dtype))
    col = jnp.concatenate(parts, axis=-1)                  # (TB, Lspan_pad, KD_pad)

    # One MXU matmul per tile, contraction depth KD_pad (vs. D per tap before),
    # f32 accumulation.  Lspan_pad % 16 == 0 so both reshapes are free relayouts.
    y = jnp.dot(col.reshape(TB * Lspan_pad, KD_pad), w_ref[...],
                preferred_element_type=jnp.float32)
    y = y.reshape(TB, Lspan_pad, C_pad)

    # Zero conv positions that are invalid for a branch (smaller Lout), padded
    # time rows, and pad channels; then max over time and a single small ReLU:
    #   max_t relu(y_t) == relu(max_t (y_t * mask_t))   (relu is monotone and
    #   masked positions contribute exactly 0).
    y = y * mask_ref[...][None, :, :]
    o_ref[...] = jnp.maximum(jnp.max(y, axis=1), 0.0).astype(o_ref.dtype)


@functools.partial(jax.jit, static_argnames=("Kmax", "Kmin", "block_b"))
def textcnn_fused_forward(x, w_packed, k_per_channel, Kmax, Kmin, block_b=128):
    """All branches of textCNN in one pallas_call. Returns (B, C_pad) f32."""
    B, L, D = x.shape
    KD_pad, C_pad = w_packed.shape
    assert L >= Kmax, "sequence shorter than the largest conv kernel"

    Lspan = L - Kmin + 1                       # largest Lout over the branches
    Lspan_pad = _round_up(Lspan, 16)           # bf16 sublane tile -> free reshape
    L_ext = Lspan_pad + Kmax - 1               # time extent needed by tap slices

    TB = _pick_batch_tile(B, block_b)

    # Crude per-tile VMEM budget (lane padding of the D=32 input accounted for);
    # keep well under v7x's 64 MiB physical VMEM.
    def vmem_bytes(tb):
        lane = lambda n: _round_up(n, 128)
        return (2 * tb * L * lane(D) * 4           # double-buffered f32 x block
                + tb * L_ext * lane(D) * 2         # bf16 cast + time pad
                + tb * Lspan_pad * KD_pad * 2      # im2col operand
                + 2 * tb * Lspan_pad * C_pad * 4)  # matmul result + masked copy
    while TB > 8 and vmem_bytes(TB) > 40 * 1024 * 1024:
        TB = max(8, _round_up(TB // 2, 8))

    grid_b = pl.cdiv(B, TB)
    B_pad = grid_b * TB          # output rows past B are garbage and sliced away

    # (Lspan_pad, C_pad) 0/1 validity mask, built once per call (tiny, resident).
    t = jnp.arange(Lspan_pad, dtype=jnp.int32)[:, None]
    mask = (t < (L - k_per_channel + 1)).astype(jnp.float32)

    out = pl.pallas_call(
        functools.partial(_textcnn_fused_kernel, Kmax=Kmax,
                          Lspan_pad=Lspan_pad, L_ext=L_ext),
        out_shape=jax.ShapeDtypeStruct((B_pad, C_pad), jnp.float32),
        grid_spec=pltpu.PrefetchScalarGridSpec(
            num_scalar_prefetch=0,
            grid=(grid_b,),
            in_specs=[
                pl.BlockSpec((TB, L, D), lambda b: (b, 0, 0)),       # x tile (ragged last tile OK)
                pl.BlockSpec((KD_pad, C_pad), lambda b: (0, 0)),     # packed weights+bias (resident)
                pl.BlockSpec((Lspan_pad, C_pad), lambda b: (0, 0)),  # validity mask (resident)
            ],
            out_specs=pl.BlockSpec((TB, C_pad), lambda b: (b, 0)),
        ),
        compiler_params=pltpu.CompilerParams(
            dimension_semantics=("parallel",),          # shard batch tiles over TCs
            vmem_limit_bytes=48 * 1024 * 1024,          # safe on v5e/v6e/v7x (64 MiB phys)
        ),
    )(x, w_packed, mask)
    return out[:B]


class TextCNNPallas:
    """Deterministic synthetic parameters, forward == PyTorch textCNN.forward."""

    def __init__(self, in_dim, kernel_sizes, nums_channels, key,
                 compute_dtype=jnp.bfloat16):
        self.in_dim = in_dim
        self.kernel_sizes = tuple(kernel_sizes)
        self.nums_channels = tuple(nums_channels)
        self.compute_dtype = compute_dtype

        # PyTorch-layout f32 parameters (kept for the reference check).
        self.params = []
        for i, (c, k) in enumerate(zip(nums_channels, kernel_sizes)):
            kw, kb = jax.random.split(jax.random.fold_in(key, i))
            bound = 1.0 / math.sqrt(in_dim * k)      # PyTorch Conv1d init bound
            w = jax.random.uniform(kw, (c, in_dim, k), jnp.float32, -bound, bound)
            b = jax.random.uniform(kb, (c,), jnp.float32, -bound, bound)
            self.params.append((w, b))

        # Pack all branches ONCE into an im2col weight of shape (KD_pad, C_pad):
        #   row j*D+d, col c  = w[c, d, j]  for j < k_branch, else 0
        #   row Kmax*D        = bias (folded into the matmul via a ones column)
        #   rows > Kmax*D     = 0 (hit by the constant-1 pad columns)
        # Channels padded to a lane-dense multiple of 128.
        self.Kmax = max(self.kernel_sizes)
        self.Kmin = min(self.kernel_sizes)
        self.C_total = sum(self.nums_channels)
        # TODO(synk): round to 256 when C_total > 128 for better v6e/v7x MXU column fill.
        self.C_pad = _round_up(self.C_total, 128)
        KD = self.Kmax * in_dim
        self.KD_pad = _round_up(KD + 1, 128)

        w_packed = jnp.zeros((self.KD_pad, self.C_pad), jnp.float32)
        # Pad channels get a huge "kernel size" so their valid length is < 0
        # (mask is 0 everywhere for them).
        k_per_channel = jnp.full((1, self.C_pad), 2 ** 20, jnp.int32)
        off = 0
        for (w, b), k in zip(self.params, self.kernel_sizes):
            c = w.shape[0]
            w_kd_c = jnp.transpose(w, (2, 1, 0)).reshape(k * in_dim, c)  # row = j*D+d
            w_packed = w_packed.at[:k * in_dim, off:off + c].set(w_kd_c)
            w_packed = w_packed.at[KD, off:off + c].set(b)               # bias row
            k_per_channel = k_per_channel.at[0, off:off + c].set(k)
            off += c

        self.w_packed = w_packed.astype(compute_dtype)    # bf16 MXU input (bias in bf16 too)
        self.k_per_channel = k_per_channel

    def __call__(self, inputs):
        # inputs: (B, L, in_dim); the PyTorch permute is folded into the packed
        # weight layout, so activations stay in their natural (B, L, D) layout.
        out = textcnn_fused_forward(
            inputs, self.w_packed, self.k_per_channel,
            Kmax=self.Kmax, Kmin=self.Kmin)
        return out[:, :self.C_total]                       # drop pad channels


def _reference_forward(model, x):
    """Plain-JAX reference (independent of the kernel), same bf16 matmul inputs."""
    cd = model.compute_dtype
    xb = x.astype(cd)
    B, L, D = x.shape
    outs = []
    for (w, b), k in zip(model.params, model.kernel_sizes):
        Lout = L - k + 1
        taps = jnp.stack([xb[:, j:j + Lout, :] for j in range(k)], axis=-1)  # (B,Lout,D,K)
        conv = jnp.einsum("blnk,cnk->blc", taps, w.astype(cd),
                          preferred_element_type=jnp.float32) + b[None, None, :]
        outs.append(jnp.max(jax.nn.relu(conv), axis=1))
    return jnp.concatenate(outs, axis=1)


if __name__ == "__main__":
    key = jax.random.PRNGKey(0)
    k_in, k_in2, k_model = jax.random.split(key, 3)

    in_dim = 32
    kernel_sizes = (3, 4, 5)
    nums_channels = (8, 8, 8)
    model = TextCNNPallas(in_dim, kernel_sizes, nums_channels, k_model)

    # Small demo shapes.
    B, L = 2, 16
    x = jax.random.normal(k_in, (B, L, in_dim), jnp.float32)
    out = jax.block_until_ready(model(x))
    ref = _reference_forward(model, x)
    assert out.shape == (B, sum(nums_channels))
    assert jnp.allclose(out, ref, atol=2e-3, rtol=2e-3), \
        float(jnp.max(jnp.abs(out - ref)))

    # Ragged batch tile + multi-step grid + non-aligned sequence length.
    B2, L2 = 13, 21
    x2 = jax.random.normal(k_in2, (B2, L2, in_dim), jnp.float32)
    out2 = jax.block_until_ready(model(x2))
    ref2 = _reference_forward(model, x2)
    assert out2.shape == (B2, sum(nums_channels))
    assert jnp.allclose(out2, ref2, atol=2e-3, rtol=2e-3), \
        float(jnp.max(jnp.abs(out2 - ref2)))

    print("KERNEL_OK")
</pallas_src>

<mosaic_0001>
module attributes {stable_mosaic.version = 11 : i64} {
  func.func @_textcnn_fused_kernel(%arg0: i32, %arg1: memref<8x16x32xf32, #tpu.memory_space<vmem>>, %arg2: memref<256x128xbf16, #tpu.memory_space<vmem>>, %arg3: memref<16x128xf32, #tpu.memory_space<vmem>>, %arg4: memref<8x128xf32, #tpu.memory_space<vmem>>) attributes {dimension_semantics = [#tpu.dimension_semantics<parallel>], iteration_bounds = array<i64: 1>, scalar_prefetch = 0 : i64, scratch_operands = 0 : i64, tpu.core_type = #tpu.core_type<tc>, window_params = [{transform_indices = @transform_0, window_bounds = array<i64: 8, 16, 32>}, {pipeline_mode = #tpu.pipeline_mode<synchronous>, transform_indices = @transform_1, window_bounds = array<i64: 256, 128>}, {pipeline_mode = #tpu.pipeline_mode<synchronous>, transform_indices = @transform_2, window_bounds = array<i64: 16, 128>}, {transform_indices = @transform_3, window_bounds = array<i64: 8, 128>}]} {
    %c0 = arith.constant 0 : index
    %c0_0 = arith.constant 0 : index
    %c0_1 = arith.constant 0 : index
    %0 = vector.load %arg1[%c0, %c0_0, %c0_1] : memref<8x16x32xf32, #tpu.memory_space<vmem>>, vector<8x16x32xf32>
    %1 = arith.truncf %0 : vector<8x16x32xf32> to vector<8x16x32xbf16>
    %cst = arith.constant 0.000000e+00 : bf16
    %2 = vector.broadcast %cst : bf16 to vector<8x4x32xbf16>
    %3 = tpu.concatenate %1, %2 in 1 : vector<8x16x32xbf16>, vector<8x4x32xbf16> -> vector<8x20x32xbf16>
    %4 = vector.extract_strided_slice %3 {offsets = [0, 0, 0], sizes = [8, 16, 32], strides = [1, 1, 1]} : vector<8x20x32xbf16> to vector<8x16x32xbf16>
    %5 = vector.extract_strided_slice %3 {offsets = [0, 1, 0], sizes = [8, 16, 32], strides = [1, 1, 1]} : vector<8x20x32xbf16> to vector<8x16x32xbf16>
    %6 = vector.extract_strided_slice %3 {offsets = [0, 2, 0], sizes = [8, 16, 32], strides = [1, 1, 1]} : vector<8x20x32xbf16> to vector<8x16x32xbf16>
    %7 = vector.extract_strided_slice %3 {offsets = [0, 3, 0], sizes = [8, 16, 32], strides = [1, 1, 1]} : vector<8x20x32xbf16> to vector<8x16x32xbf16>
    %8 = vector.extract_strided_slice %3 {offsets = [0, 4, 0], sizes = [8, 16, 32], strides = [1, 1, 1]} : vector<8x20x32xbf16> to vector<8x16x32xbf16>
    %cst_2 = arith.constant 1.000000e+00 : bf16
    %9 = vector.broadcast %cst_2 : bf16 to vector<8x16x96xbf16>
    %10 = tpu.concatenate %4, %5, %6, %7, %8, %9 in 2 : vector<8x16x32xbf16>, vector<8x16x32xbf16>, vector<8x16x32xbf16>, vector<8x16x32xbf16>, vector<8x16x32xbf16>, vector<8x16x96xbf16> -> vector<8x16x256xbf16>
    %11 = vector.shape_cast %10 : vector<8x16x256xbf16> to vector<128x256xbf16>
    %c0_3 = arith.constant 0 : index
    %c0_4 = arith.constant 0 : index
    %12 = vector.load %arg2[%c0_3, %c0_4] : memref<256x128xbf16, #tpu.memory_space<vmem>>, vector<256x128xbf16>
    %cst_5 = arith.constant dense<0.000000e+00> : vector<128x128xf32>
    %13 = tpu.matmul %11, %12, %cst_5 {dimension_numbers = #tpu.dot_dimension_numbers<[1], [0], [0], [1], [0, 0, 1, 1], [], []>} : vector<128x256xbf16>, vector<256x128xbf16>, vector<128x128xf32> -> vector<128x128xf32>
    %14 = vector.shape_cast %13 : vector<128x128xf32> to vector<8x16x128xf32>
    %c0_6 = arith.constant 0 : index
    %c0_7 = arith.constant 0 : index
    %15 = vector.load %arg3[%c0_6, %c0_7] : memref<16x128xf32, #tpu.memory_space<vmem>>, vector<16x128xf32>
    %16 = vector.shape_cast %15 : vector<16x128xf32> to vector<1x16x128xf32>
    %17 = vector.broadcast %16 : vector<1x16x128xf32> to vector<8x16x128xf32>
    %18 = arith.mulf %14, %17 : vector<8x16x128xf32>
    %cst_8 = arith.constant dense<0xFF800000> : vector<8x128xf32>
    %19 = vector.multi_reduction <maximumf>, %18, %cst_8 [1] : vector<8x16x128xf32> to vector<8x128xf32>
    %cst_9 = arith.constant 0.000000e+00 : f32
    %20 = vector.broadcast %cst_9 : f32 to vector<8x128xf32>
    %21 = arith.maximumf %19, %20 : vector<8x128xf32>
    %c0_10 = arith.constant 0 : index
    %c0_11 = arith.constant 0 : index
    %22 = vector.load %arg4[%c0_10, %c0_11] : memref<8x128xf32, #tpu.memory_space<vmem>>, vector<8x128xf32>
    tpu.vector_store %arg4[%c0_10, %c0_11], %21 {strides = array<i32>} : memref<8x128xf32, #tpu.memory_space<vmem>>, vector<8x128xf32>,
    return
  }
  func.func @transform_0(%arg0: i32) -> (i32, i32, i32) {
    %c0_i32 = arith.constant 0 : i32
    %c0_i32_0 = arith.constant 0 : i32
    %c0_i32_1 = arith.constant 0 : i32
    return %arg0, %c0_i32, %c0_i32_0 : i32, i32, i32
  }
  func.func @transform_1(%arg0: i32) -> (i32, i32) {
    %c0_i32 = arith.constant 0 : i32
    %c0_i32_0 = arith.constant 0 : i32
    %c0_i32_1 = arith.constant 0 : i32
    return %c0_i32, %c0_i32_0 : i32, i32
  }
  func.func @transform_2(%arg0: i32) -> (i32, i32) {
    %c0_i32 = arith.constant 0 : i32
    %c0_i32_0 = arith.constant 0 : i32
    %c0_i32_1 = arith.constant 0 : i32
    return %c0_i32, %c0_i32_0 : i32, i32
  }
  func.func @transform_3(%arg0: i32) -> (i32, i32) {
    %c0_i32 = arith.constant 0 : i32
    %c0_i32_0 = arith.constant 0 : i32
    return %arg0, %c0_i32 : i32, i32
  }
}

</mosaic_0001>

<llo_original>
// kernel: textcnn_fused_forward.1
$region0: #{textcnn_fused_forward.1}
  #allocation0 [shape = 'u32[]', space=smem, size = 0x4, offset = 0x4, fixed_abs, tag = 'smem constant byte address 0x4 - core index']
  #allocation1 [shape = 'u32[144,128]{1,0:T(1,128)}', space=vmem, size = 0x12000, scoped, tag = 'internal scratch']
  %s0 = inlined_call_operand.hbm [shape: f32[2,16,32], index: 0, kind: input, shape index: {}]
  %s1 = inlined_call_operand.hbm [shape: bf16[256,128], index: 1, kind: input, shape index: {}]
  %s2 = inlined_call_operand.vmem [shape: f32[16,128], index: 2, kind: input, shape index: {}]
  %s3 = inlined_call_operand.vmem [shape: f32[8,128], index: 3, kind: output, shape index: {}]
  %s4 = sld [smem:[#allocation0]]
  $region30: #{textcnn_fused_forward.1} parent=0
    _
  %s6 = ssub.s32 1, %s4
  %s7 = scalar_select 0, %s6, %s4
  $region1: #{textcnn_fused_forward.1} parent=0
    #allocation2 [shape = 'u8[65536]{0}', space=vmem, size = 0x10000, scoped, tag = 'input window, operand 0, single buffered']
    #allocation3 [shape = 's32[1]{0}', space=sflag, size = 0x4, scoped, tag = 'scoped memory for textcnn_fused_forward.1']
    #allocation4 [shape = 'u8[65536]{0}', space=vmem, size = 0x10000, scoped, tag = 'input window, operand 1, single buffered']
    #allocation5 [shape = 's32[1]{0}', space=sflag, size = 0x4, scoped, tag = 'scoped memory for textcnn_fused_forward.1']
    %8 = vsyncpa [#allocation3], 0
    %9 = vsyncpa [#allocation5], 0
    // Predicated region
    $region2: #{textcnn_fused_forward.1} parent=1 // pred_check
      _
    $region3: #{textcnn_fused_forward.1} parent=1 // pred_check_branch
      %11 = sbr.rel (0) target = $region5
    $region4: #{textcnn_fused_forward.1} parent=1 // pred_region
      %s13 = ssub.s32 2048, 512
      %14 = vsyncadd [#allocation3], %s13
      %s15 = sshll.u32 [#allocation2], 4
      %s16 = int_to_ptr.vmem [resolvable:$true] %s15
      %21 = dma.hbm_to_vmem [thread:$0]  %s0, 512, %s16, [#allocation3], 128, 128, 8
    $region5: #{textcnn_fused_forward.1} parent=1 // pred_fallthru
      _
    // Predicated region
    $region6: #{textcnn_fused_forward.1} parent=1 // pred_check
      _
    $region7: #{textcnn_fused_forward.1} parent=1 // pred_check_branch
      %23 = sbr.rel (0) target = $region9
    $region8: #{textcnn_fused_forward.1} parent=1 // pred_region
      %s25 = ssub.s32 2048, 2048
      %26 = vsyncadd [#allocation5], %s25
      %s27 = sshll.u32 [#allocation4], 4
      %s28 = int_to_ptr.vmem [resolvable:$true] %s27
      %33 = dma.hbm_to_vmem [thread:$0]  %s1, 2048, %s28, [#allocation5], 64, 64, 4
    $region9: #{textcnn_fused_forward.1} parent=1 // pred_fallthru
      _
    // Predicated region
    $region10: #{textcnn_fused_forward.1} parent=1 // pred_check
      _
    $region11: #{textcnn_fused_forward.1} parent=1 // pred_check_branch
      %35 = sbr.rel (0) target = $region13
    $region12: #{textcnn_fused_forward.1} parent=1 // pred_region
      _
    $region13: #{textcnn_fused_forward.1} parent=1 // pred_fallthru
      _
    // Predicated region
    $region14: #{textcnn_fused_forward.1} parent=1 // pred_check
      _
    $region15: #{textcnn_fused_forward.1} parent=1 // pred_check_branch
      %37 = sbr.rel (0) target = $region17
    $region16: #{textcnn_fused_forward.1} parent=1 // pred_region
      %38 = dma.done [#allocation3], 2048
    $region17: #{textcnn_fused_forward.1} parent=1 // pred_fallthru
      _
    // Predicated region
    $region18: #{textcnn_fused_forward.1} parent=1 // pred_check
      _
    $region19: #{textcnn_fused_forward.1} parent=1 // pred_check_branch
      %40 = sbr.rel (0) target = $region21
    $region20: #{textcnn_fused_forward.1} parent=1 // pred_region
      %41 = dma.done [#allocation5], 2048
    $region21: #{textcnn_fused_forward.1} parent=1 // pred_fallthru
      _
    %v44 = vld [vmem:[#allocation2] sm:$0xff]
    %v45 = vld [vmem:[#allocation2 + $0x8] sm:$0xff]
    %v46 = vld [vmem:[#allocation2 + $0x10] sm:$0xff]
    %v47 = vld [vmem:[#allocation2 + $0x18] sm:$0xff]
    %v48 = vld [vmem:[#allocation2 + $0x20] sm:$0xff]
    %v49 = vld [vmem:[#allocation2 + $0x28] sm:$0xff]
    %v50 = vld [vmem:[#allocation2 + $0x30] sm:$0xff]
    %v51 = vld [vmem:[#allocation2 + $0x38] sm:$0xff]
    %v52 = vld [vmem:[#allocation2 + $0x40] sm:$0xff]
    %v53 = vld [vmem:[#allocation2 + $0x48] sm:$0xff]
    %v54 = vld [vmem:[#allocation2 + $0x50] sm:$0xff]
    %v55 = vld [vmem:[#allocation2 + $0x58] sm:$0xff]
    %v56 = vld [vmem:[#allocation2 + $0x60] sm:$0xff]
    %v57 = vld [vmem:[#allocation2 + $0x68] sm:$0xff]
    %v58 = vld [vmem:[#allocation2 + $0x70] sm:$0xff]
    %v59 = vld [vmem:[#allocation2 + $0x78] sm:$0xff]
    %v60 = vpack.c.bf16 %v45, %v44
    %v61 = vpack.c.bf16 %v47, %v46
    %v62 = vpack.c.bf16 %v49, %v48
    %v63 = vpack.c.bf16 %v51, %v50
    %v64 = vpack.c.bf16 %v53, %v52
    %v65 = vpack.c.bf16 %v55, %v54
    %v66 = vpack.c.bf16 %v57, %v56
    %v67 = vpack.c.bf16 %v59, %v58
    %vm68 = vsmask.f32 7424
    %v70 = vshrl.u32 %v60, 16
    %v72 = vshll.u32 %v60, 16
    %v74 = vrot.slane %v72, 1
    %v75 = vor.u32 %v70, %v74
    %v77 = vshll.u32 0, 16
    %v79 = vrot.slane %v77, 1
    %v80 = vsel %vm68, %v75, %v79
    %v82 = vshrl.u32 %v61, 16
    %v84 = vshll.u32 %v61, 16
    %v86 = vrot.slane %v84, 1
    %v87 = vor.u32 %v82, %v86
    %v88 = vsel %vm68, %v87, %v79
    %v90 = vshrl.u32 %v62, 16
    %v92 = vshll.u32 %v62, 16
    %v94 = vrot.slane %v92, 1
    %v95 = vor.u32 %v90, %v94
    %v96 = vsel %vm68, %v95, %v79
    %v98 = vshrl.u32 %v63, 16
    %v100 = vshll.u32 %v63, 16
    %v102 = vrot.slane %v100, 1
    %v103 = vor.u32 %v98, %v102
    %v104 = vsel %vm68, %v103, %v79
    %v106 = vshrl.u32 %v64, 16
    %v108 = vshll.u32 %v64, 16
    %v110 = vrot.slane %v108, 1
    %v111 = vor.u32 %v106, %v110
    %v112 = vsel %vm68, %v111, %v79
    %v114 = vshrl.u32 %v65, 16
    %v116 = vshll.u32 %v65, 16
    %v118 = vrot.slane %v116, 1
    %v119 = vor.u32 %v114, %v118
    %v120 = vsel %vm68, %v119, %v79
    %v122 = vshrl.u32 %v66, 16
    %v124 = vshll.u32 %v66, 16
    %v126 = vrot.slane %v124, 1
    %v127 = vor.u32 %v122, %v126
    %v128 = vsel %vm68, %v127, %v79
    %v130 = vshrl.u32 %v67, 16
    %v132 = vshll.u32 %v67, 16
    %v134 = vrot.slane %v132, 1
    %v135 = vor.u32 %v130, %v134
    %v136 = vsel %vm68, %v135, %v79
    %137 = vrot.lane.b32.xlu0 %v80, 32
    %v138 = vpop.permute.xlu0 %137
    %139 = vrot.lane.b32.xlu0 %v88, 32
    %v140 = vpop.permute.xlu0 %139
    %141 = vrot.lane.b32.xlu0 %v96, 32
    %v142 = vpop.permute.xlu0 %141
    %143 = vrot.lane.b32.xlu0 %v104, 32
    %v144 = vpop.permute.xlu0 %143
    %145 = vrot.lane.b32.xlu0 %v112, 32
    %v146 = vpop.permute.xlu0 %145
    %147 = vrot.lane.b32.xlu0 %v120, 32
    %v148 = vpop.permute.xlu0 %147
    %149 = vrot.lane.b32.xlu0 %v128, 32
    %v150 = vpop.permute.xlu0 %149
    %151 = vrot.lane.b32.xlu0 %v136, 32
    %v152 = vpop.permute.xlu0 %151
    %vm162 = vcmask 1046528
    %v163 = vrot.slane %v60, 1
    %v164 = vrot.slane 0, 1
    %v165 = vsel %vm162, %v163, %v164
    %v166 = vrot.slane %v61, 1
    %v167 = vsel %vm162, %v166, %v164
    %v168 = vrot.slane %v62, 1
    %v169 = vsel %vm162, %v168, %v164
    %v170 = vrot.slane %v63, 1
    %v171 = vsel %vm162, %v170, %v164
    %v172 = vrot.slane %v64, 1
    %v173 = vsel %vm162, %v172, %v164
    %v174 = vrot.slane %v65, 1
    %v175 = vsel %vm162, %v174, %v164
    %v176 = vrot.slane %v66, 1
    %v177 = vsel %vm162, %v176, %v164
    %v178 = vrot.slane %v67, 1
    %v179 = vsel %vm162, %v178, %v164
    %180 = vrot.lane.b32.xlu0 %v165, 64
    %v181 = vpop.permute.xlu0 %180
    %182 = vrot.lane.b32.xlu0 %v167, 64
    %v183 = vpop.permute.xlu0 %182
    %184 = vrot.lane.b32.xlu0 %v169, 64
    %v185 = vpop.permute.xlu0 %184
    %186 = vrot.lane.b32.xlu0 %v171, 64
    %v187 = vpop.permute.xlu0 %186
    %188 = vrot.lane.b32.xlu0 %v173, 64
    %v189 = vpop.permute.xlu0 %188
    %190 = vrot.lane.b32.xlu0 %v175, 64
    %v191 = vpop.permute.xlu0 %190
    %192 = vrot.lane.b32.xlu0 %v177, 64
    %v193 = vpop.permute.xlu0 %192
    %194 = vrot.lane.b32.xlu0 %v179, 64
    %v195 = vpop.permute.xlu0 %194
    %vm196 = vsmask.f32 6400
    %v197 = vrot.slane %v70, 1
    %v198 = vrot.slane %v72, 2
    %v199 = vor.u32 %v197, %v198
    %v200 = vshrl.u32 0, 16
    %v202 = vrot.slane %v200, 1
    %v203 = vrot.slane %v77, 2
    %v204 = vor.u32 %v202, %v203
    %v205 = vsel %vm196, %v199, %v204
    %v206 = vrot.slane %v82, 1
    %v207 = vrot.slane %v84, 2
    %v208 = vor.u32 %v206, %v207
    %v209 = vsel %vm196, %v208, %v204
    %v210 = vrot.slane %v90, 1
    %v211 = vrot.slane %v92, 2
    %v212 = vor.u32 %v210, %v211
    %v213 = vsel %vm196, %v212, %v204
    %v214 = vrot.slane %v98, 1
    %v215 = vrot.slane %v100, 2
    %v216 = vor.u32 %v214, %v215
    %v217 = vsel %vm196, %v216, %v204
    %v218 = vrot.slane %v106, 1
    %v219 = vrot.slane %v108, 2
    %v220 = vor.u32 %v218, %v219
    %v221 = vsel %vm196, %v220, %v204
    %v222 = vrot.slane %v114, 1
    %v223 = vrot.slane %v116, 2
    %v224 = vor.u32 %v222, %v223
    %v225 = vsel %vm196, %v224, %v204
    %v226 = vrot.slane %v122, 1
    %v227 = vrot.slane %v124, 2
    %v228 = vor.u32 %v226, %v227
    %v229 = vsel %vm196, %v228, %v204
    %v230 = vrot.slane %v130, 1
    %v231 = vrot.slane %v132, 2
    %v232 = vor.u32 %v230, %v231
    %v233 = vsel %vm196, %v232, %v204
    %234 = vrot.lane.b32.xlu0 %v205, 96
    %v235 = vpop.permute.xlu0 %234
    %236 = vrot.lane.b32.xlu0 %v209, 96
    %v237 = vpop.permute.xlu0 %236
    %238 = vrot.lane.b32.xlu0 %v213, 96
    %v239 = vpop.permute.xlu0 %238
    %240 = vrot.lane.b32.xlu0 %v217, 96
    %v241 = vpop.permute.xlu0 %240
    %242 = vrot.lane.b32.xlu0 %v221, 96
    %v243 = vpop.permute.xlu0 %242
    %244 = vrot.lane.b32.xlu0 %v225, 96
    %v245 = vpop.permute.xlu0 %244
    %246 = vrot.lane.b32.xlu0 %v229, 96
    %v247 = vpop.permute.xlu0 %246
    %248 = vrot.lane.b32.xlu0 %v233, 96
    %v249 = vpop.permute.xlu0 %248
    %vm250 = vcmask 1045504
    %v251 = vrot.slane %v60, 2
    %v252 = vrot.slane 0, 2
    %v253 = vsel %vm250, %v251, %v252
    %v254 = vrot.slane %v61, 2
    %v255 = vsel %vm250, %v254, %v252
    %v256 = vrot.slane %v62, 2
    %v257 = vsel %vm250, %v256, %v252
    %v258 = vrot.slane %v63, 2
    %v259 = vsel %vm250, %v258, %v252
    %v260 = vrot.slane %v64, 2
    %v261 = vsel %vm250, %v260, %v252
    %v262 = vrot.slane %v65, 2
    %v263 = vsel %vm250, %v262, %v252
    %v264 = vrot.slane %v66, 2
    %v265 = vsel %vm250, %v264, %v252
    %v266 = vrot.slane %v67, 2
    %v267 = vsel %vm250, %v266, %v252
    %vm268 = vcmask 261120
    %v270 = vsel %vm268, %v60, %v138
    %v272 = vsel %vm268, %v61, %v140
    %v274 = vsel %vm268, %v62, %v142
    %v276 = vsel %vm268, %v63, %v144
    %v278 = vsel %vm268, %v64, %v146
    %v280 = vsel %vm268, %v65, %v148
    %v282 = vsel %vm268, %v66, %v150
    %v284 = vsel %vm268, %v67, %v152
    %vm285 = vcmask 523264
    %v287 = vsel %vm285, %v270, %v181
    %v289 = vsel %vm285, %v272, %v183
    %v291 = vsel %vm285, %v274, %v185
    %v293 = vsel %vm285, %v276, %v187
    %v295 = vsel %vm285, %v278, %v189
    %v297 = vsel %vm285, %v280, %v191
    %v299 = vsel %vm285, %v282, %v193
    %v301 = vsel %vm285, %v284, %v195
    %vm302 = vcmask 785408
    %v304 = vsel %vm302, %v287, %v235
    %v307 = vsel %vm302, %v289, %v237
    %v310 = vsel %vm302, %v291, %v239
    %v313 = vsel %vm302, %v293, %v241
    %v316 = vsel %vm302, %v295, %v243
    %v319 = vsel %vm302, %v297, %v245
    %v322 = vsel %vm302, %v299, %v247
    %v325 = vsel %vm302, %v301, %v249
    %v329 = vsel %vm268, %v253, 1065369472
    %v332 = vsel %vm268, %v255, 1065369472
    %v335 = vsel %vm268, %v257, 1065369472
    %v338 = vsel %vm268, %v259, 1065369472
    %v341 = vsel %vm268, %v261, 1065369472
    %v344 = vsel %vm268, %v263, 1065369472
    %v347 = vsel %vm268, %v265, 1065369472
    %v350 = vsel %vm268, %v267, 1065369472
    %v352 = vld [vmem:[#allocation4] sm:$0xf]
    %v353 = vld [vmem:[#allocation4 + $0x4] sm:$0xf]
    %v354 = vld [vmem:[#allocation4 + $0x8] sm:$0xf]
    %v355 = vld [vmem:[#allocation4 + $0xc] sm:$0xf]
    %v356 = vld [vmem:[#allocation4 + $0x10] sm:$0xf]
    %v357 = vld [vmem:[#allocation4 + $0x14] sm:$0xf]
    %v358 = vld [vmem:[#allocation4 + $0x18] sm:$0xf]
    %v359 = vld [vmem:[#allocation4 + $0x1c] sm:$0xf]
    %v360 = vld [vmem:[#allocation4 + $0x20] sm:$0xf]
    %v361 = vld [vmem:[#allocation4 + $0x24] sm:$0xf]
    %v362 = vld [vmem:[#allocation4 + $0x28] sm:$0xf]
    %v363 = vld [vmem:[#allocation4 + $0x2c] sm:$0xf]
    %v364 = vld [vmem:[#allocation4 + $0x30] sm:$0xf]
    %v365 = vld [vmem:[#allocation4 + $0x34] sm:$0xf]
    %v366 = vld [vmem:[#allocation4 + $0x38] sm:$0xf]
    %v367 = vld [vmem:[#allocation4 + $0x3c] sm:$0xf]
    %v368 = vld [vmem:[#allocation4 + $0x40] sm:$0xf]
    %v369 = vld [vmem:[#allocation4 + $0x44] sm:$0xf]
    %v370 = vld [vmem:[#allocation4 + $0x48] sm:$0xf]
    %v371 = vld [vmem:[#allocation4 + $0x4c] sm:$0xf]
    %v372 = vld [vmem:[#allocation4 + $0x50] sm:$0xf]
    %v373 = vld [vmem:[#allocation4 + $0x54] sm:$0xf]
    %v374 = vld [vmem:[#allocation4 + $0x58] sm:$0xf]
    %v375 = vld [vmem:[#allocation4 + $0x5c] sm:$0xf]
    %v376 = vld [vmem:[#allocation4 + $0x60] sm:$0xf]
    %v377 = vld [vmem:[#allocation4 + $0x64] sm:$0xf]
    %v378 = vld [vmem:[#allocation4 + $0x68] sm:$0xf]
    %v379 = vld [vmem:[#allocation4 + $0x6c] sm:$0xf]
    %v380 = vld [vmem:[#allocation4 + $0x70] sm:$0xf]
    %v381 = vld [vmem:[#allocation4 + $0x74] sm:$0xf]
    %v382 = vld [vmem:[#allocation4 + $0x78] sm:$0xf]
    %v383 = vld [vmem:[#allocation4 + $0x7c] sm:$0xf]
    %v416 = vunpack.c.l.b16 %v352
    %v417 = vunpack.c.l.b16 %v353
    %v418 = vunpack.c.l.b16 %v354
    %v419 = vunpack.c.l.b16 %v355
    %v420 = vunpack.c.l.b16 %v356
    %v421 = vunpack.c.l.b16 %v357
    %v422 = vunpack.c.l.b16 %v358
    %v423 = vunpack.c.l.b16 %v359
    %v424 = vunpack.c.l.b16 %v360
    %v425 = vunpack.c.l.b16 %v361
    %v426 = vunpack.c.l.b16 %v362
    %v427 = vunpack.c.l.b16 %v363
    %v428 = vunpack.c.l.b16 %v364
    %v429 = vunpack.c.l.b16 %v365
    %v430 = vunpack.c.l.b16 %v366
    %v431 = vunpack.c.l.b16 %v367
    %v432 = vunpack.c.l.b16 %v368
    %v433 = vunpack.c.l.b16 %v369
    %v434 = vunpack.c.l.b16 %v370
    %v435 = vunpack.c.l.b16 %v371
    %v436 = vunpack.c.l.b16 %v372
    %v437 = vunpack.c.l.b16 %v373
    %v438 = vunpack.c.l.b16 %v374
    %v439 = vunpack.c.l.b16 %v375
    %v440 = vunpack.c.l.b16 %v376
    %v441 = vunpack.c.l.b16 %v377
    %v442 = vunpack.c.l.b16 %v378
    %v443 = vunpack.c.l.b16 %v379
    %v444 = vunpack.c.l.b16 %v380
    %v445 = vunpack.c.l.b16 %v381
    %v446 = vunpack.c.l.b16 %v382
    %v447 = vunpack.c.l.b16 %v383
    %v448 = vpack.c.b16 %v417, %v416
    %v449 = vpack.c.b16 %v419, %v418
    %v450 = vpack.c.b16 %v421, %v420
    %v451 = vpack.c.b16 %v423, %v422
    %v452 = vpack.c.b16 %v425, %v424
    %v453 = vpack.c.b16 %v427, %v426
    %v454 = vpack.c.b16 %v429, %v428
    %v455 = vpack.c.b16 %v431, %v430
    %v456 = vpack.c.b16 %v433, %v432
    %v457 = vpack.c.b16 %v435, %v434
    %v458 = vpack.c.b16 %v437, %v436
    %v459 = vpack.c.b16 %v439, %v438
    %v460 = vpack.c.b16 %v441, %v440
    %v461 = vpack.c.b16 %v443, %v442
    %v462 = vpack.c.b16 %v445, %v444
    %v463 = vpack.c.b16 %v447, %v446
    %480 = vmatprep.subr.bf16.mxu0 0
    %481 = vmatpush1.bf16.msra.mxu0 %v455
    %482 = vmatprep.subr.bf16.mxu0 0
    %483 = vmatpush1.bf16.msra.mxu0 %v454
    %484 = vmatprep.subr.bf16.mxu0 0
    %485 = vmatpush1.bf16.msra.mxu0 %v453
    %486 = vmatprep.subr.bf16.mxu0 0
    %487 = vmatpush1.bf16.msra.mxu0 %v452
    %488 = vmatprep.subr.bf16.mxu0 0
    %489 = vmatpush1.bf16.msra.mxu0 %v451
    %490 = vmatprep.subr.bf16.mxu0 0
    %491 = vmatpush1.bf16.msra.mxu0 %v450
    %492 = vmatprep.subr.bf16.mxu0 0
    %493 = vmatpush1.bf16.msra.mxu0 %v449
    %494 = vmatprep.subr.bf16.mxu0 0
    %495 = vmatpush1.bf16.msra.mxu0 %v448
    %496 = vmatprep.subr.bf16.mxu0 0
    %497 = vmatpush2.bf16.msra.mxu0 %v463
    %498 = vmatprep.subr.bf16.mxu0 0
    %499 = vmatpush2.bf16.msra.mxu0 %v462
    %500 = vmatprep.subr.bf16.mxu0 0
    %501 = vmatpush2.bf16.msra.mxu0 %v461
    %502 = vmatprep.subr.bf16.mxu0 0
    %503 = vmatpush2.bf16.msra.mxu0 %v460
    %504 = vmatprep.subr.bf16.mxu0 0
    %505 = vmatpush2.bf16.msra.mxu0 %v459
    %506 = vmatprep.subr.bf16.mxu0 0
    %507 = vmatpush2.bf16.msra.mxu0 %v458
    %508 = vmatprep.subr.bf16.mxu0 0
    %509 = vmatpush2.bf16.msra.mxu0 %v457
    %510 = vmatprep.subr.bf16.mxu0 0
    %511 = vmatpush2.bf16.msra.mxu0 %v456
    %512 = vmatprep.mubr.bf16.mxu0 %v329
    %513 = vmatmul.mubr.bf16.gmra.mxu0 %v304
    %v514 = vpop.f32.mrf.mxu0
    %v515 = vadd.f32 0.0, %v514
    %v516 = vpop.f32.mrf.mxu0
    %v517 = vpop.f32.mrf.mxu0
    %v518 = vadd.f32 0.0, %v517
    %v519 = vpop.f32.mrf.mxu0
    %520 = vmatprep.mubr.bf16.mxu0 %v332
    %521 = vmatmul.mubr.bf16.gmra.mxu0 %v307
    %v522 = vpop.f32.mrf.mxu0
    %v523 = vadd.f32 0.0, %v522
    %v524 = vpop.f32.mrf.mxu0
    %v525 = vpop.f32.mrf.mxu0
    %v526 = vadd.f32 0.0, %v525
    %v527 = vpop.f32.mrf.mxu0
    %528 = vmatprep.mubr.bf16.mxu0 %v335
    %529 = vmatmul.mubr.bf16.gmra.mxu0 %v310
    %v530 = vpop.f32.mrf.mxu0
    %v531 = vadd.f32 0.0, %v530
    %v532 = vpop.f32.mrf.mxu0
    %v533 = vpop.f32.mrf.mxu0
    %v534 = vadd.f32 0.0, %v533
    %v535 = vpop.f32.mrf.mxu0
    %536 = vmatprep.mubr.bf16.mxu0 %v338
    %537 = vmatmul.mubr.bf16.gmra.mxu0 %v313
    %v538 = vpop.f32.mrf.mxu0
    %v539 = vadd.f32 0.0, %v538
    %v540 = vpop.f32.mrf.mxu0
    %v541 = vpop.f32.mrf.mxu0
    %v542 = vadd.f32 0.0, %v541
    %v543 = vpop.f32.mrf.mxu0
    %544 = vmatprep.mubr.bf16.mxu0 %v341
    %545 = vmatmul.mubr.bf16.gmra.mxu0 %v316
    %v546 = vpop.f32.mrf.mxu0
    %v547 = vadd.f32 0.0, %v546
    %v548 = vpop.f32.mrf.mxu0
    %v549 = vpop.f32.mrf.mxu0
    %v550 = vadd.f32 0.0, %v549
    %v551 = vpop.f32.mrf.mxu0
    %552 = vmatprep.mubr.bf16.mxu0 %v344
    %553 = vmatmul.mubr.bf16.gmra.mxu0 %v319
    %v554 = vpop.f32.mrf.mxu0
    %v555 = vadd.f32 0.0, %v554
    %v556 = vpop.f32.mrf.mxu0
    %v557 = vpop.f32.mrf.mxu0
    %v558 = vadd.f32 0.0, %v557
    %v559 = vpop.f32.mrf.mxu0
    %560 = vmatprep.mubr.bf16.mxu0 %v347
    %561 = vmatmul.mubr.bf16.gmra.mxu0 %v322
    %v562 = vpop.f32.mrf.mxu0
    %v563 = vadd.f32 0.0, %v562
    %v564 = vpop.f32.mrf.mxu0
    %v565 = vpop.f32.mrf.mxu0
    %v566 = vadd.f32 0.0, %v565
    %v567 = vpop.f32.mrf.mxu0
    %568 = vmatprep.mubr.bf16.mxu0 %v350
    %569 = vmatmul.mubr.bf16.gmra.mxu0 %v325
    %v570 = vpop.f32.mrf.mxu0
    %v571 = vadd.f32 0.0, %v570
    %v572 = vpop.f32.mrf.mxu0
    %v573 = vpop.f32.mrf.mxu0
    %v574 = vadd.f32 0.0, %v573
    %v575 = vpop.f32.mrf.mxu0
    %576 = vdwg.mxu0
    %v577 = vld [vmem:[%s2] sm:$0xff]
    %v578 = vld [vmem:[%s2 + $0x8] sm:$0xff]
    %v579 = vmul.f32 %v515, %v577
    %v580 = vmul.f32 %v518, %v578
    %v581 = vmul.f32 %v523, %v577
    %v582 = vmul.f32 %v526, %v578
    %v583 = vmul.f32 %v531, %v577
    %v584 = vmul.f32 %v534, %v578
    %v585 = vmul.f32 %v539, %v577
    %v586 = vmul.f32 %v542, %v578
    %v587 = vmul.f32 %v547, %v577
    %v588 = vmul.f32 %v550, %v578
    %v589 = vmul.f32 %v555, %v577
    %v590 = vmul.f32 %v558, %v578
    %v591 = vmul.f32 %v563, %v577
    %v592 = vmul.f32 %v566, %v578
    %v593 = vmul.f32 %v571, %v577
    %v594 = vmul.f32 %v574, %v578
    %v595 = vmax.f32 %v579, %v580
    %v596 = vrot.slane %v595, 4
    %v597 = vmax.f32 %v595, %v596
    %v598 = vrot.slane %v597, 2
    %v599 = vmax.f32 %v597, %v598
    %v600 = vrot.slane %v599, 1
    %v601 = vmax.f32 %v599, %v600
    %v602 = vmax.f32 %v581, %v582
    %v603 = vrot.slane %v602, 4
    %v604 = vmax.f32 %v602, %v603
    %v605 = vrot.slane %v604, 2
    %v606 = vmax.f32 %v604, %v605
    %v607 = vrot.slane %v606, 1
    %v608 = vmax.f32 %v606, %v607
    %v609 = vmax.f32 %v583, %v584
    %v610 = vrot.slane %v609, 4
    %v611 = vmax.f32 %v609, %v610
    %v612 = vrot.slane %v611, 2
    %v613 = vmax.f32 %v611, %v612
    %v614 = vrot.slane %v613, 1
    %v615 = vmax.f32 %v613, %v614
    %v616 = vmax.f32 %v585, %v586
    %v617 = vrot.slane %v616, 4
    %v618 = vmax.f32 %v616, %v617
    %v619 = vrot.slane %v618, 2
    %v620 = vmax.f32 %v618, %v619
    %v621 = vrot.slane %v620, 1
    %v622 = vmax.f32 %v620, %v621
    %v623 = vmax.f32 %v587, %v588
    %v624 = vrot.slane %v623, 4
    %v625 = vmax.f32 %v623, %v624
    %v626 = vrot.slane %v625, 2
    %v627 = vmax.f32 %v625, %v626
    %v628 = vrot.slane %v627, 1
    %v629 = vmax.f32 %v627, %v628
    %v630 = vmax.f32 %v589, %v590
    %v631 = vrot.slane %v630, 4
    %v632 = vmax.f32 %v630, %v631
    %v633 = vrot.slane %v632, 2
    %v634 = vmax.f32 %v632, %v633
    %v635 = vrot.slane %v634, 1
    %v636 = vmax.f32 %v634, %v635
    %v637 = vmax.f32 %v591, %v592
    %v638 = vrot.slane %v637, 4
    %v639 = vmax.f32 %v637, %v638
    %v640 = vrot.slane %v639, 2
    %v641 = vmax.f32 %v639, %v640
    %v642 = vrot.slane %v641, 1
    %v643 = vmax.f32 %v641, %v642
    %v644 = vmax.f32 %v593, %v594
    %v645 = vrot.slane %v644, 4
    %v646 = vmax.f32 %v644, %v645
    %v647 = vrot.slane %v646, 2
    %v648 = vmax.f32 %v646, %v647
    %v649 = vrot.slane %v648, 1
    %v650 = vmax.f32 %v648, %v649
    %v651 = vmax.f32 %v601, 0.0
    %v652 = vmax.f32 %v608, 0.0
    %v653 = vmax.f32 %v615, 0.0
    %v654 = vmax.f32 %v622, 0.0
    %v655 = vmax.f32 %v629, 0.0
    %v656 = vmax.f32 %v636, 0.0
    %v657 = vmax.f32 %v643, 0.0
    %v658 = vmax.f32 %v650, 0.0
    %vm667 = vcmask 1041409
    %v668 = vsel %vm667, %v652, %v651
    %vm669 = vcmask 1042434
    %v670 = vsel %vm669, %v653, %v668
    %vm671 = vcmask 1043459
    %v672 = vsel %vm671, %v654, %v670
    %vm673 = vcmask 1044484
    %v674 = vsel %vm673, %v655, %v672
    %vm675 = vcmask 1045509
    %v676 = vsel %vm675, %v656, %v674
    %vm677 = vcmask 1046534
    %v678 = vsel %vm677, %v657, %v676
    %vm679 = vcmask 1047559
    %v680 = vsel %vm679, %v658, %v678
    %682 = vst [vmem:[%s3] sm:$0xff] %v680
    // Predicated region
    $region22: #{textcnn_fused_forward.1} parent=1 // pred_check
      _
    $region23: #{textcnn_fused_forward.1} parent=1 // pred_check_branch
      %684 = sbr.rel (0) target = $region25
    $region24: #{textcnn_fused_forward.1} parent=1 // pred_region
      _
    $region25: #{textcnn_fused_forward.1} parent=1 // pred_fallthru
      _
    // Predicated region
    $region26: #{textcnn_fused_forward.1} parent=1 // pred_check
      _
    $region27: #{textcnn_fused_forward.1} parent=1 // pred_check_branch
      %686 = sbr.rel (0) target = $region29
    $region28: #{textcnn_fused_forward.1} parent=1 // pred_region
      _
    $region29: #{textcnn_fused_forward.1} parent=1 // pred_fallthru
      _
    %687 = vsyncpa [#allocation3], 1
    %688 = vsyncpa [#allocation5], 1

</llo_original>
